<compile_context>
chip_gen: v7x
topology: tpu7x:2x2x1
jax: 0.10.0
libtpu: 0.0.40
codegen_flags: <defaults>
</compile_context>

<pallas_src>
import functools
import math

import jax
import jax.numpy as jnp
from jax.experimental import pallas as pl
from jax.experimental.pallas import tpu as pltpu

_LANE = 128


def _round_up(n, m):
    return ((n + m - 1) // m) * m


def _choose_spatial_chunk(hw, pw):
    """Largest chunk that is a multiple of P*W and 128, divides H*W, <=8K lanes."""
    unit = pw * _LANE // math.gcd(pw, _LANE)
    if hw % unit != 0:
        return hw                         # single full-width chunk
    n_units = hw // unit
    n = min(n_units, max(1, 8192 // unit))
    while n_units % n != 0:
        n -= 1
    return n * unit


def _disc_kernel(x_ref, s_ref, w_pe_ref, b_emb_ref, w_head_ref, b_head_ref,
                 out_ref, acc_ref, *, channels, num_classes, inv_np):
    """Grid = (batch tiles [parallel], spatial chunks [arbitrary / reduction]).

    x_ref:      (TB, C, L)       input chunk (f32 or bf16); L lanes of the H*W axis
    s_ref:      (L, P*P)         f32 0/1 selection matrix: lane -> in-patch (i, j)
    w_pe_ref:   (C, P*P, E_pad)  f32 natural-size patch-embed weight
    b_emb_ref:  (1, E_pad)       f32
    w_head_ref: (NC, E_pad)      f32
    b_head_ref: (1, OUT_LANES)   f32 (head bias scattered into lanes 0..NC-1)
    out_ref:    (TB, OUT_LANES)  f32 lane-dense output block
    acc_ref:    (TB, C, L)       f32 scratch accumulator
    """
    k = pl.program_id(1)

    @pl.when(k == 0)
    def _init():
        acc_ref[...] = jnp.zeros_like(acc_ref)

    # Hot path: pure VPU accumulate of the raw x chunk (f32 accumulation).
    # The chunk width L is a multiple of P*W, so a lane's position mod (P*W)
    # maps to a fixed in-patch position across all chunks; the actual fold to
    # (i, j) happens once in the epilogue.
    acc_ref[...] += x_ref[...].astype(jnp.float32)

    @pl.when(k == pl.num_programs(1) - 1)
    def _epilogue():
        tb = out_ref.shape[0]
        out_lanes = out_ref.shape[1]
        e_pad = w_pe_ref.shape[-1]

        # Patch-position pooling + patch embed, channel by channel:
        #   pooled_c = acc_c @ S            -> (TB, P*P)  (sums over hp, wp)
        #   emb     += pooled_c @ W_pe[c]   -> (TB, E_pad)
        # TODO(synk): for large C (e.g. 256) run this as a channel-chunked
        # fori_loop / batched matmul instead of a fully unrolled Python loop.
        emb = jnp.zeros((tb, e_pad), jnp.float32)
        for c in range(channels):
            pooled_c = jnp.dot(acc_ref[:, c, :], s_ref[...],
                               preferred_element_type=jnp.float32)
            emb = emb + jnp.dot(pooled_c, w_pe_ref[c],
                                preferred_element_type=jnp.float32)
        emb = emb * inv_np + b_emb_ref[...]

        # TODO(synk): VMambaNeck / SS2D would act on the pre-pool (Hp, Wp, E)
        # feature map; identity here, which is what allows pooling x before
        # the patch-embed matmul.

        # Classifier head: VPU multiply + lane reduction per class (no MXU
        # matmul against a 128-padded head weight).  Padded E lanes of emb are
        # exact zeros (zero-padded weights / biases), so no masking is needed.
        cols = jax.lax.broadcasted_iota(jnp.int32, (tb, out_lanes), 1)
        logits = jnp.zeros((tb, out_lanes), jnp.float32)
        for cls in range(num_classes):
            l_c = jnp.sum(emb * w_head_ref[cls:cls + 1, :], axis=-1,
                          keepdims=True)
            logits = jnp.where(cols == cls, l_c, logits)
        out_ref[...] = logits + b_head_ref[...]


def prepare_discriminator_params(conv_w, conv_b, head_w, head_b, *,
                                 img_size, patch_size, spatial_chunk=None):
    """One-time weight/constant prep (hoisted out of the per-call forward).

    conv_w: (E, C, P, P) patch_embed Conv2d weight (kernel = stride = P)
    conv_b: (E,)   head_w: (NC, E)   head_b: (NC,)
    Returns a dict of device arrays consumed by vmamba_discriminator_forward.
    """
    E, C, P, P2 = conv_w.shape
    assert P == P2 == patch_size, (conv_w.shape, patch_size)
    NC = head_w.shape[0]
    assert 1 <= NC <= _LANE, "num_classes must fit one lane tile"
    H = W = img_size
    HW, PW, PP = H * W, P * W, P * P

    L = _choose_spatial_chunk(HW, PW) if spatial_chunk is None else spatial_chunk
    assert HW % L == 0 and L % PW == 0, (HW, L, PW)
    assert L % _LANE == 0 or L == HW, (L,)

    E_pad = _round_up(E, _LANE)

    # 0/1 selection matrix: lane position within a chunk -> in-patch (i, j).
    lane = jnp.arange(L, dtype=jnp.int32)
    pos = lane % PW
    i = pos // W
    j = (pos % W) % P
    m = i * P + j
    s_pool = (m[:, None] == jnp.arange(PP, dtype=jnp.int32)[None, :]
              ).astype(jnp.float32)                                   # (L, PP)

    # Natural-size patch-embed weight, rows ordered (i, j): (C, P*P, E_pad).
    w_pe = jnp.transpose(conv_w.astype(jnp.float32), (1, 2, 3, 0))    # (C,P,P,E)
    w_pe = w_pe.reshape(C, PP, E)
    w_pe = jnp.pad(w_pe, ((0, 0), (0, 0), (0, E_pad - E)))

    b_emb = jnp.pad(conv_b.astype(jnp.float32), (0, E_pad - E)).reshape(1, E_pad)
    w_hd = jnp.pad(head_w.astype(jnp.float32), ((0, 0), (0, E_pad - E)))
    b_hd = jnp.pad(head_b.astype(jnp.float32), (0, _LANE - NC)).reshape(1, _LANE)

    return {"s_pool": s_pool, "w_pe": w_pe, "b_emb": b_emb,
            "w_head": w_hd, "b_head": b_hd}


@functools.partial(jax.jit, static_argnames=("patch_size", "batch_tile"))
def vmamba_discriminator_forward(x_nchw, params, *, patch_size, batch_tile=None):
    """x_nchw: (B, C, H, W). Returns (B, num_classes) float32.

    Pass x as bfloat16 to halve the dominant HBM stream; all accumulation and
    the epilogue run in float32 either way.
    """
    B, C, H, W = x_nchw.shape
    P = patch_size
    HW, PW = H * W, P * W

    s_pool = params["s_pool"]
    w_pe = params["w_pe"]
    b_emb = params["b_emb"]
    w_head = params["w_head"]
    b_head = params["b_head"]

    L, PP = s_pool.shape
    NC = w_head.shape[0]
    E_pad = w_pe.shape[-1]
    OUT_LANES = b_head.shape[-1]
    Np = HW // PP
    assert w_pe.shape[0] == C and PP == P * P, (w_pe.shape, C, P)
    assert HW % L == 0 and L % PW == 0, (HW, L, PW)

    # Batch tiling: one tile for small B; >=2 "parallel" tiles when B >= 16 so
    # both v7x TensorCores (megacore) get work.  (MXU rows stay M-starved at
    # tiny B regardless; the kernel is HBM-bound on the x read by design.)
    if batch_tile is None:
        batch_tile = B if B < 16 else -(-B // 2)
    TB = max(1, min(batch_tile, B))
    if TB < B:
        TB = min(_round_up(TB, 8), B)     # sublane-aligned output tiles
    B_pad = B if TB == B else _round_up(B, TB)

    # The only op on x outside the kernel: a free row-major reshape (+ batch
    # zero-pad only when B is not a multiple of the batch tile).
    x3 = x_nchw.reshape(B, C, HW)
    if B_pad != B:
        x3 = jnp.pad(x3, ((0, B_pad - B), (0, 0), (0, 0)))

    n_bt = B_pad // TB
    n_k = HW // L

    kernel = functools.partial(_disc_kernel, channels=C, num_classes=NC,
                               inv_np=1.0 / float(Np))

    flops = (B_pad * C * HW                               # pooling accumulate
             + 2 * B_pad * C * (L * PP + PP * E_pad)      # epilogue matmuls
             + 2 * B_pad * NC * E_pad)                    # head
    bytes_accessed = (x3.size * x3.dtype.itemsize
                      + (s_pool.size + w_pe.size + b_emb.size
                         + w_head.size + b_head.size) * 4
                      + B_pad * OUT_LANES * 4)

    out = pl.pallas_call(
        kernel,
        out_shape=jax.ShapeDtypeStruct((B_pad, OUT_LANES), jnp.float32),
        grid_spec=pltpu.PrefetchScalarGridSpec(
            num_scalar_prefetch=0,
            grid=(n_bt, n_k),
            in_specs=[
                pl.BlockSpec((TB, C, L), lambda i, k: (i, 0, k)),
                # Grid-invariant operands (fetched once, kept resident).
                pl.BlockSpec((L, PP), lambda i, k: (0, 0)),
                pl.BlockSpec((C, PP, E_pad), lambda i, k: (0, 0, 0)),
                pl.BlockSpec((1, E_pad), lambda i, k: (0, 0)),
                pl.BlockSpec((NC, E_pad), lambda i, k: (0, 0)),
                pl.BlockSpec((1, OUT_LANES), lambda i, k: (0, 0)),
            ],
            out_specs=pl.BlockSpec((TB, OUT_LANES), lambda i, k: (i, 0)),
            scratch_shapes=[pltpu.VMEM((TB, C, L), jnp.float32)],
        ),
        compiler_params=pltpu.CompilerParams(
            dimension_semantics=("parallel", "arbitrary"),
            vmem_limit_bytes=64 * 1024 * 1024),
        cost_estimate=pl.CostEstimate(
            flops=int(flops), transcendentals=0,
            bytes_accessed=int(bytes_accessed)),
    )(x3, s_pool, w_pe, b_emb, w_head, b_head)

    return out[:B, :NC]


def _reference_forward(x_nchw, conv_w, conv_b, head_w, head_b, patch_size):
    """Pure-JAX reference following the module's literal op order."""
    B, C, H, W = x_nchw.shape
    P = patch_size
    E = conv_w.shape[0]
    Hp, Wp = H // P, W // P
    patches = x_nchw.reshape(B, C, Hp, P, Wp, P).transpose(0, 2, 4, 1, 3, 5)
    patches = patches.reshape(B, Hp * Wp, C * P * P)
    emb = patches @ conv_w.reshape(E, -1).T + conv_b[None, None, :]
    pooled = emb.mean(axis=1)                     # AdaptiveAvgPool2d(1)
    return pooled @ head_w.T + head_b[None, :]


if __name__ == "__main__":
    # Small shapes consistent with the module: channels=4 (= embed_dim),
    # patch_size=4, img_size=16, batch=2, num_classes=1.
    B, C, H, W = 2, 4, 16, 16
    P = 4
    E = C
    NC = 1

    key = jax.random.PRNGKey(0)
    kx, kw1, kb1, kw2, kb2 = jax.random.split(key, 5)

    x = jax.random.normal(kx, (B, C, H, W), dtype=jnp.float32)
    conv_w = 0.05 * jax.random.normal(kw1, (E, C, P, P), dtype=jnp.float32)
    conv_b = 0.01 * jax.random.normal(kb1, (E,), dtype=jnp.float32)
    head_w = 0.05 * jax.random.normal(kw2, (NC, E), dtype=jnp.float32)
    head_b = 0.01 * jax.random.normal(kb2, (NC,), dtype=jnp.float32)

    ref = _reference_forward(x, conv_w, conv_b, head_w, head_b, P)

    # One-time prep (hoisted out of the per-call path).  spatial_chunk=128
    # gives 2 chunks at 16x16 so the in-kernel reduction axis is exercised.
    params = prepare_discriminator_params(conv_w, conv_b, head_w, head_b,
                                          img_size=H, patch_size=P,
                                          spatial_chunk=128)

    # f32 x stream: tight check against the literal-op-order reference.
    out_f32 = jax.block_until_ready(
        vmamba_discriminator_forward(x, params, patch_size=P))
    assert out_f32.shape == (B, NC), out_f32.shape
    assert jnp.allclose(out_f32, ref, atol=1e-4, rtol=1e-4), (out_f32, ref)

    # bf16 x stream (halves the dominant HBM read); f32 accumulation/epilogue.
    out_bf16 = jax.block_until_ready(
        vmamba_discriminator_forward(x.astype(jnp.bfloat16), params,
                                     patch_size=P))
    assert out_bf16.shape == (B, NC), out_bf16.shape
    assert jnp.allclose(out_bf16, ref, atol=5e-3, rtol=5e-2), (out_bf16, ref)

    print("KERNEL_OK")
</pallas_src>

<mosaic_0001>
module attributes {stable_mosaic.version = 11 : i64} {
  func.func @_disc_kernel(%arg0: i32, %arg1: i32, %arg2: memref<2x4x128xf32, #tpu.memory_space<vmem>>, %arg3: memref<128x16xf32, #tpu.memory_space<vmem>>, %arg4: memref<4x16x128xf32, #tpu.memory_space<vmem>>, %arg5: memref<1x128xf32, #tpu.memory_space<vmem>>, %arg6: memref<1x128xf32, #tpu.memory_space<vmem>>, %arg7: memref<1x128xf32, #tpu.memory_space<vmem>>, %arg8: memref<2x128xf32, #tpu.memory_space<vmem>>, %arg9: memref<2x4x128xf32, #tpu.memory_space<vmem>>) attributes {dimension_semantics = [#tpu.dimension_semantics<parallel>, #tpu.dimension_semantics<arbitrary>], iteration_bounds = array<i64: 1, 2>, scalar_prefetch = 0 : i64, scratch_operands = 1 : i64, tpu.core_type = #tpu.core_type<tc>, window_params = [{transform_indices = @transform_0, window_bounds = array<i64: 2, 4, 128>}, {pipeline_mode = #tpu.pipeline_mode<synchronous>, transform_indices = @transform_1, window_bounds = array<i64: 128, 16>}, {pipeline_mode = #tpu.pipeline_mode<synchronous>, transform_indices = @transform_2, window_bounds = array<i64: 4, 16, 128>}, {pipeline_mode = #tpu.pipeline_mode<synchronous>, transform_indices = @transform_3, window_bounds = array<i64: 1, 128>}, {pipeline_mode = #tpu.pipeline_mode<synchronous>, transform_indices = @transform_4, window_bounds = array<i64: 1, 128>}, {pipeline_mode = #tpu.pipeline_mode<synchronous>, transform_indices = @transform_5, window_bounds = array<i64: 1, 128>}, {transform_indices = @transform_6, window_bounds = array<i64: 2, 128>}]} {
    %c0_i32 = arith.constant 0 : i32
    %0 = arith.cmpi eq, %arg1, %c0_i32 : i32
    %1 = arith.extui %0 : i1 to i32
    %c0_i32_0 = arith.constant 0 : i32
    %2 = arith.cmpi ne, %1, %c0_i32_0 : i32
    scf.if %2 {
      %cst = arith.constant 0.000000e+00 : f32
      %10 = vector.broadcast %cst : f32 to vector<2x4x128xf32>
      %c0_10 = arith.constant 0 : index
      %c0_11 = arith.constant 0 : index
      %c0_12 = arith.constant 0 : index
      %11 = vector.load %arg9[%c0_10, %c0_11, %c0_12] : memref<2x4x128xf32, #tpu.memory_space<vmem>>, vector<2x4x128xf32>
      tpu.vector_store %arg9[%c0_10, %c0_11, %c0_12], %10 {strides = array<i32>} : memref<2x4x128xf32, #tpu.memory_space<vmem>>, vector<2x4x128xf32>,
    } else {
    }
    %c0 = arith.constant 0 : index
    %c0_1 = arith.constant 0 : index
    %c0_2 = arith.constant 0 : index
    %3 = vector.load %arg9[%c0, %c0_1, %c0_2] : memref<2x4x128xf32, #tpu.memory_space<vmem>>, vector<2x4x128xf32>
    %c0_3 = arith.constant 0 : index
    %c0_4 = arith.constant 0 : index
    %c0_5 = arith.constant 0 : index
    %4 = vector.load %arg2[%c0_3, %c0_4, %c0_5] : memref<2x4x128xf32, #tpu.memory_space<vmem>>, vector<2x4x128xf32>
    %5 = arith.addf %3, %4 : vector<2x4x128xf32>
    %c0_6 = arith.constant 0 : index
    %c0_7 = arith.constant 0 : index
    %c0_8 = arith.constant 0 : index
    %6 = vector.load %arg9[%c0_6, %c0_7, %c0_8] : memref<2x4x128xf32, #tpu.memory_space<vmem>>, vector<2x4x128xf32>
    tpu.vector_store %arg9[%c0_6, %c0_7, %c0_8], %5 {strides = array<i32>} : memref<2x4x128xf32, #tpu.memory_space<vmem>>, vector<2x4x128xf32>,
    %c1_i32 = arith.constant 1 : i32
    %7 = arith.cmpi eq, %arg1, %c1_i32 : i32
    %8 = arith.extui %7 : i1 to i32
    %c0_i32_9 = arith.constant 0 : i32
    %9 = arith.cmpi ne, %8, %c0_i32_9 : i32
    scf.if %9 {
      %cst = arith.constant 0.000000e+00 : f32
      %10 = vector.broadcast %cst : f32 to vector<2x128xf32>
      %c0_10 = arith.constant 0 : index
      %c0_11 = arith.constant 0 : index
      %c0_12 = arith.constant 0 : index
      %11 = vector.load %arg9[%c0_10, %c0_11, %c0_12] : memref<2x4x128xf32, #tpu.memory_space<vmem>>, vector<2x1x128xf32>
      %12 = vector.shape_cast %11 : vector<2x1x128xf32> to vector<2x128xf32>
      %c0_13 = arith.constant 0 : index
      %c0_14 = arith.constant 0 : index
      %13 = vector.load %arg3[%c0_13, %c0_14] : memref<128x16xf32, #tpu.memory_space<vmem>>, vector<128x16xf32>
      %cst_15 = arith.constant dense<0.000000e+00> : vector<2x16xf32>
      %14 = tpu.matmul %12, %13, %cst_15 {dimension_numbers = #tpu.dot_dimension_numbers<[1], [0], [0], [1], [0, 0, 1, 1], [], []>} : vector<2x128xf32>, vector<128x16xf32>, vector<2x16xf32> -> vector<2x16xf32>
      %c0_16 = arith.constant 0 : index
      %c0_17 = arith.constant 0 : index
      %c0_18 = arith.constant 0 : index
      %15 = vector.load %arg4[%c0_16, %c0_17, %c0_18] : memref<4x16x128xf32, #tpu.memory_space<vmem>>, vector<1x16x128xf32>
      %16 = vector.shape_cast %15 : vector<1x16x128xf32> to vector<16x128xf32>
      %cst_19 = arith.constant dense<0.000000e+00> : vector<2x128xf32>
      %17 = tpu.matmul %14, %16, %cst_19 {dimension_numbers = #tpu.dot_dimension_numbers<[1], [0], [0], [1], [0, 0, 1, 1], [], []>} : vector<2x16xf32>, vector<16x128xf32>, vector<2x128xf32> -> vector<2x128xf32>
      %18 = arith.addf %10, %17 : vector<2x128xf32>
      %c0_20 = arith.constant 0 : index
      %c1 = arith.constant 1 : index
      %c0_21 = arith.constant 0 : index
      %19 = vector.load %arg9[%c0_20, %c1, %c0_21] : memref<2x4x128xf32, #tpu.memory_space<vmem>>, vector<2x1x128xf32>
      %20 = vector.shape_cast %19 : vector<2x1x128xf32> to vector<2x128xf32>
      %c0_22 = arith.constant 0 : index
      %c0_23 = arith.constant 0 : index
      %21 = vector.load %arg3[%c0_22, %c0_23] : memref<128x16xf32, #tpu.memory_space<vmem>>, vector<128x16xf32>
      %cst_24 = arith.constant dense<0.000000e+00> : vector<2x16xf32>
      %22 = tpu.matmul %20, %21, %cst_24 {dimension_numbers = #tpu.dot_dimension_numbers<[1], [0], [0], [1], [0, 0, 1, 1], [], []>} : vector<2x128xf32>, vector<128x16xf32>, vector<2x16xf32> -> vector<2x16xf32>
      %c1_25 = arith.constant 1 : index
      %c0_26 = arith.constant 0 : index
      %c0_27 = arith.constant 0 : index
      %23 = vector.load %arg4[%c1_25, %c0_26, %c0_27] : memref<4x16x128xf32, #tpu.memory_space<vmem>>, vector<1x16x128xf32>
      %24 = vector.shape_cast %23 : vector<1x16x128xf32> to vector<16x128xf32>
      %cst_28 = arith.constant dense<0.000000e+00> : vector<2x128xf32>
      %25 = tpu.matmul %22, %24, %cst_28 {dimension_numbers = #tpu.dot_dimension_numbers<[1], [0], [0], [1], [0, 0, 1, 1], [], []>} : vector<2x16xf32>, vector<16x128xf32>, vector<2x128xf32> -> vector<2x128xf32>
      %26 = arith.addf %18, %25 : vector<2x128xf32>
      %c0_29 = arith.constant 0 : index
      %c2 = arith.constant 2 : index
      %c0_30 = arith.constant 0 : index
      %27 = vector.load %arg9[%c0_29, %c2, %c0_30] : memref<2x4x128xf32, #tpu.memory_space<vmem>>, vector<2x1x128xf32>
      %28 = vector.shape_cast %27 : vector<2x1x128xf32> to vector<2x128xf32>
      %c0_31 = arith.constant 0 : index
      %c0_32 = arith.constant 0 : index
      %29 = vector.load %arg3[%c0_31, %c0_32] : memref<128x16xf32, #tpu.memory_space<vmem>>, vector<128x16xf32>
      %cst_33 = arith.constant dense<0.000000e+00> : vector<2x16xf32>
      %30 = tpu.matmul %28, %29, %cst_33 {dimension_numbers = #tpu.dot_dimension_numbers<[1], [0], [0], [1], [0, 0, 1, 1], [], []>} : vector<2x128xf32>, vector<128x16xf32>, vector<2x16xf32> -> vector<2x16xf32>
      %c2_34 = arith.constant 2 : index
      %c0_35 = arith.constant 0 : index
      %c0_36 = arith.constant 0 : index
      %31 = vector.load %arg4[%c2_34, %c0_35, %c0_36] : memref<4x16x128xf32, #tpu.memory_space<vmem>>, vector<1x16x128xf32>
      %32 = vector.shape_cast %31 : vector<1x16x128xf32> to vector<16x128xf32>
      %cst_37 = arith.constant dense<0.000000e+00> : vector<2x128xf32>
      %33 = tpu.matmul %30, %32, %cst_37 {dimension_numbers = #tpu.dot_dimension_numbers<[1], [0], [0], [1], [0, 0, 1, 1], [], []>} : vector<2x16xf32>, vector<16x128xf32>, vector<2x128xf32> -> vector<2x128xf32>
      %34 = arith.addf %26, %33 : vector<2x128xf32>
      %c0_38 = arith.constant 0 : index
      %c3 = arith.constant 3 : index
      %c0_39 = arith.constant 0 : index
      %35 = vector.load %arg9[%c0_38, %c3, %c0_39] : memref<2x4x128xf32, #tpu.memory_space<vmem>>, vector<2x1x128xf32>
      %36 = vector.shape_cast %35 : vector<2x1x128xf32> to vector<2x128xf32>
      %c0_40 = arith.constant 0 : index
      %c0_41 = arith.constant 0 : index
      %37 = vector.load %arg3[%c0_40, %c0_41] : memref<128x16xf32, #tpu.memory_space<vmem>>, vector<128x16xf32>
      %cst_42 = arith.constant dense<0.000000e+00> : vector<2x16xf32>
      %38 = tpu.matmul %36, %37, %cst_42 {dimension_numbers = #tpu.dot_dimension_numbers<[1], [0], [0], [1], [0, 0, 1, 1], [], []>} : vector<2x128xf32>, vector<128x16xf32>, vector<2x16xf32> -> vector<2x16xf32>
      %c3_43 = arith.constant 3 : index
      %c0_44 = arith.constant 0 : index
      %c0_45 = arith.constant 0 : index
      %39 = vector.load %arg4[%c3_43, %c0_44, %c0_45] : memref<4x16x128xf32, #tpu.memory_space<vmem>>, vector<1x16x128xf32>
      %40 = vector.shape_cast %39 : vector<1x16x128xf32> to vector<16x128xf32>
      %cst_46 = arith.constant dense<0.000000e+00> : vector<2x128xf32>
      %41 = tpu.matmul %38, %40, %cst_46 {dimension_numbers = #tpu.dot_dimension_numbers<[1], [0], [0], [1], [0, 0, 1, 1], [], []>} : vector<2x16xf32>, vector<16x128xf32>, vector<2x128xf32> -> vector<2x128xf32>
      %42 = arith.addf %34, %41 : vector<2x128xf32>
      %cst_47 = arith.constant 6.250000e-02 : f32
      %43 = vector.broadcast %cst_47 : f32 to vector<2x128xf32>
      %44 = arith.mulf %42, %43 : vector<2x128xf32>
      %c0_48 = arith.constant 0 : index
      %c0_49 = arith.constant 0 : index
      %45 = vector.load %arg5[%c0_48, %c0_49] : memref<1x128xf32, #tpu.memory_space<vmem>>, vector<1x128xf32>
      %46 = vector.broadcast %45 : vector<1x128xf32> to vector<2x128xf32>
      %47 = arith.addf %44, %46 : vector<2x128xf32>
      %48 = tpu.iota {dimensions = array<i32: 1>} : vector<2x128xi32>
      %cst_50 = arith.constant 0.000000e+00 : f32
      %49 = vector.broadcast %cst_50 : f32 to vector<2x128xf32>
      %c0_51 = arith.constant 0 : index
      %c0_52 = arith.constant 0 : index
      %50 = vector.load %arg6[%c0_51, %c0_52] : memref<1x128xf32, #tpu.memory_space<vmem>>, vector<1x128xf32>
      %51 = vector.broadcast %50 : vector<1x128xf32> to vector<2x128xf32>
      %52 = arith.mulf %47, %51 : vector<2x128xf32>
      %cst_53 = arith.constant dense<0.000000e+00> : vector<2xf32>
      %53 = vector.multi_reduction <add>, %52, %cst_53 [1] : vector<2x128xf32> to vector<2xf32>
      %54 = vector.shape_cast %53 : vector<2xf32> to vector<2x1xf32>
      %c0_i32_54 = arith.constant 0 : i32
      %55 = vector.broadcast %c0_i32_54 : i32 to vector<2x128xi32>
      %56 = arith.cmpi eq, %48, %55 : vector<2x128xi32>
      %57 = vector.shape_cast %54 : vector<2x1xf32> to vector<2x1xf32>
      %58 = vector.broadcast %57 : vector<2x1xf32> to vector<2x128xf32>
      %59 = arith.select %56, %58, %49 : vector<2x128xi1>, vector<2x128xf32>
      %c0_55 = arith.constant 0 : index
      %c0_56 = arith.constant 0 : index
      %60 = vector.load %arg7[%c0_55, %c0_56] : memref<1x128xf32, #tpu.memory_space<vmem>>, vector<1x128xf32>
      %61 = vector.broadcast %60 : vector<1x128xf32> to vector<2x128xf32>
      %62 = arith.addf %59, %61 : vector<2x128xf32>
      %c0_57 = arith.constant 0 : index
      %c0_58 = arith.constant 0 : index
      %63 = vector.load %arg8[%c0_57, %c0_58] : memref<2x128xf32, #tpu.memory_space<vmem>>, vector<2x128xf32>
      tpu.vector_store %arg8[%c0_57, %c0_58], %62 {strides = array<i32>} : memref<2x128xf32, #tpu.memory_space<vmem>>, vector<2x128xf32>,
    } else {
    }
    return
  }
  func.func @transform_0(%arg0: i32, %arg1: i32) -> (i32, i32, i32) {
    %c0_i32 = arith.constant 0 : i32
    %c0_i32_0 = arith.constant 0 : i32
    return %arg0, %c0_i32, %arg1 : i32, i32, i32
  }
  func.func @transform_1(%arg0: i32, %arg1: i32) -> (i32, i32) {
    %c0_i32 = arith.constant 0 : i32
    %c0_i32_0 = arith.constant 0 : i32
    %c0_i32_1 = arith.constant 0 : i32
    return %c0_i32, %c0_i32_0 : i32, i32
  }
  func.func @transform_2(%arg0: i32, %arg1: i32) -> (i32, i32, i32) {
    %c0_i32 = arith.constant 0 : i32
    %c0_i32_0 = arith.constant 0 : i32
    %c0_i32_1 = arith.constant 0 : i32
    %c0_i32_2 = arith.constant 0 : i32
    return %c0_i32, %c0_i32_0, %c0_i32_1 : i32, i32, i32
  }
  func.func @transform_3(%arg0: i32, %arg1: i32) -> (i32, i32) {
    %c0_i32 = arith.constant 0 : i32
    %c0_i32_0 = arith.constant 0 : i32
    %c0_i32_1 = arith.constant 0 : i32
    return %c0_i32, %c0_i32_0 : i32, i32
  }
  func.func @transform_4(%arg0: i32, %arg1: i32) -> (i32, i32) {
    %c0_i32 = arith.constant 0 : i32
    %c0_i32_0 = arith.constant 0 : i32
    %c0_i32_1 = arith.constant 0 : i32
    return %c0_i32, %c0_i32_0 : i32, i32
  }
  func.func @transform_5(%arg0: i32, %arg1: i32) -> (i32, i32) {
    %c0_i32 = arith.constant 0 : i32
    %c0_i32_0 = arith.constant 0 : i32
    %c0_i32_1 = arith.constant 0 : i32
    return %c0_i32, %c0_i32_0 : i32, i32
  }
  func.func @transform_6(%arg0: i32, %arg1: i32) -> (i32, i32) {
    %c0_i32 = arith.constant 0 : i32
    %c0_i32_0 = arith.constant 0 : i32
    return %arg0, %c0_i32 : i32, i32
  }
}

</mosaic_0001>

<llo_original>
// kernel: vmamba_discriminator_forward.1
$region0: #{vmamba_discriminator_forward.1}
  #allocation0 [shape = 'u32[]', space=smem, size = 0x4, offset = 0x4, fixed_abs, tag = 'smem constant byte address 0x4 - core index']
  #allocation1 [shape = 'u32[144,128]{1,0:T(1,128)}', space=vmem, size = 0x12000, scoped, tag = 'internal scratch']
  #allocation2 [shape = 'f32[2,4,128]{2,1,0:T(4,128)}', space=vmem, size = 0x1000, scoped, tag = 'scratch operand']
  %s0 = inlined_call_operand.hbm [shape: f32[2,4,256], index: 0, kind: input, shape index: {}]
  %s1 = inlined_call_operand.hbm [shape: f32[128,16], index: 1, kind: input, shape index: {}]
  %s2 = inlined_call_operand.hbm [shape: f32[4,16,128], index: 2, kind: input, shape index: {}]
  %s3 = inlined_call_operand.hbm [shape: f32[1,128], index: 3, kind: input, shape index: {}]
  %s4 = inlined_call_operand.hbm [shape: f32[1,128], index: 4, kind: input, shape index: {}]
  %s5 = inlined_call_operand.hbm [shape: f32[1,128], index: 5, kind: input, shape index: {}]
  %s6 = inlined_call_operand.hbm [shape: f32[2,128], index: 6, kind: output, shape index: {}]
  %s7 = sld [smem:[#allocation0]]
  $region89: #{vmamba_discriminator_forward.1} parent=0
    _
  %s9 = ssub.s32 1, %s7
  %s10 = scalar_select 0, %s9, %s7
  $region1: #{vmamba_discriminator_forward.1} parent=0
    #allocation3 [shape = 'u8[8192]{0}', space=vmem, size = 0x2000, scoped, tag = 'input window, operand 0']
    #allocation4 [shape = 's32[2]{0}', space=sflag, size = 0x8, scoped, tag = 'scoped memory for vmamba_discriminator_forward.1']
    #allocation5 [shape = 's32[2]{0}', space=sflag, size = 0x8, scoped, tag = 'scoped memory for vmamba_discriminator_forward.1']
    #allocation6 [shape = 'u8[65536]{0}', space=vmem, size = 0x10000, scoped, tag = 'input window, operand 1, single buffered']
    #allocation7 [shape = 's32[1]{0}', space=sflag, size = 0x4, scoped, tag = 'scoped memory for vmamba_discriminator_forward.1']
    #allocation8 [shape = 'u8[32768]{0}', space=vmem, size = 0x8000, scoped, tag = 'input window, operand 2, single buffered']
    #allocation9 [shape = 'u8[512]{0}', space=vmem, size = 0x400, scoped, tag = 'input window, operand 3, single buffered']
    #allocation10 [shape = 's32[1]{0}', space=sflag, size = 0x4, scoped, tag = 'scoped memory for vmamba_discriminator_forward.1']
    #allocation11 [shape = 'u8[512]{0}', space=vmem, size = 0x400, scoped, tag = 'input window, operand 4, single buffered']
    #allocation12 [shape = 'u8[512]{0}', space=vmem, size = 0x400, scoped, tag = 'input window, operand 5, single buffered']
    #allocation13 [shape = 's32[1]{0}', space=sflag, size = 0x4, scoped, tag = 'scoped memory for vmamba_discriminator_forward.1']
    #allocation14 [shape = 'u8[1024]{0}', space=vmem, size = 0x400, scoped, tag = 'output window, operand 0, single buffered']
    %11 = vsyncpa [#allocation4], 0
    %s12 = scalar_lea.sflag [#allocation4], 1
    %13 = vsyncpa %s12, 0
    %14 = vsyncpa [#allocation7], 0
    %15 = vsyncpa [#allocation10], 0
    %16 = vsyncpa [#allocation13], 0
    %17 = vsyncpa [#allocation5], 0
    loop: start=0, step=1, limit=4
    $region2: #{vmamba_discriminator_forward.1} parent=1 // loop_pre_header
      _
    $region3: #{vmamba_discriminator_forward.1} parent=1 // loop_header
      %s19 = sphi 0, %s23
      %p20 = scmp.ge.s32.totalorder %s19, 4
      %s26 = sphi 0, %s38
      %s27 = sphi 0, %s34
      %s28 = sphi 0, %s26
      %s29 = sphi 0, %s27
      %s30 = sphi 0, %s28
      %s31 = sphi 0, %s29
      %s43 = sphi 0, %s45
      %s46 = sphi 0, %s43
      %s47 = sphi 0, %s46
      %s63 = sphi 0, %s47
      %s67 = sphi 0, %s67
      %s69 = sphi 0, %s67
      %s70 = sphi 0, %s69
      %s84 = sphi 0, %s70
      %s88 = sphi 0, %s88
      %s90 = sphi 0, %s88
      %s91 = sphi 0, %s90
      %s105 = sphi 0, %s91
      %s109 = sphi 0, %s109
      %s111 = sphi 0, %s109
      %s112 = sphi 0, %s111
      %s126 = sphi 0, %s112
      %s130 = sphi 0, %s130
      %s132 = sphi 0, %s130
      %s133 = sphi 0, %s132
      %s147 = sphi 0, %s133
      %s151 = sphi 0, %s151
      %s153 = sphi 0, %s151
      %s154 = sphi 0, %s153
      %s168 = sphi 0, %s154
      %s174 = sphi 0, %s176
      %s177 = sphi 0, %s174
      %s178 = sphi 0, %s177
      %s194 = sphi 0, %s178
    $region4: #{vmamba_discriminator_forward.1} parent=1 // loop_header_branch
      %22 = sbr.rel (%p20) target = $region8
    $region5: #{vmamba_discriminator_forward.1} parent=1 // loop_body
      %s24 = ssub.s32 %s19, 1
      %s25 = ssub.s32 %s19, 2
      %s32 = sadd.s32 1, %s27
      %p33 = scmp.ge.s32.totalorder %s32, 2
      %s34 = scalar_select %p33, 0, %s32
      %s35 = sadd.s32 1, %s26
      %s36 = scalar_select %p33, %s35, %s26
      %p37 = scmp.ge.s32.totalorder %s36, 1
      %s38 = scalar_select %p37, 0, %s36
      %s39 = ssub.s32 %s26, %s38
      %s40 = ssub.s32 %s27, %s34
      %s41 = sor.u32 %s39, %s40
      %p42 = scmp.eq.s32.totalorder %s41, 0
      %s44 = sadd.s32 %s43, 1
      %s45 = scalar_select %p42, %s43, %s44
      %p48 = pneg %p42
      %p49 = scmp.eq.s32.totalorder %s19, 1
      %p50 = por %p48, %p49
      %p51 = scmp.ne.s32.totalorder %s43, %s46
      %p52 = scmp.eq.s32.totalorder %s19, 0
      %p53 = por %p51, %p52
      %p54 = scmp.ne.s32.totalorder %s43, %s46
      %p55 = scmp.eq.s32.totalorder %s24, 1
      %p56 = por %p54, %p55
      %p57 = scmp.ne.s32.totalorder %s46, %s47
      %p58 = scmp.eq.s32.totalorder %s24, 0
      %p59 = por %p57, %p58
      %p60 = scmp.ne.s32.totalorder %s46, %s47
      %p61 = scmp.eq.s32.totalorder %s25, 1
      %p62 = por %p60, %p61
      %p64 = scmp.ne.s32.totalorder %s47, %s63
      %p65 = scmp.eq.s32.totalorder %s25, 0
      %p66 = por %p64, %p65
      %s68 = sadd.s32 %s67, 1
      %p71 = scmp.eq.s32.totalorder %s19, 1
      %p72 = scmp.ne.s32.totalorder %s67, %s69
      %p73 = scmp.eq.s32.totalorder %s19, 0
      %p74 = por %p72, %p73
      %p75 = scmp.ne.s32.totalorder %s67, %s69
      %p76 = scmp.eq.s32.totalorder %s24, 1
      %p77 = por %p75, %p76
      %p78 = scmp.ne.s32.totalorder %s69, %s70
      %p79 = scmp.eq.s32.totalorder %s24, 0
      %p80 = por %p78, %p79
      %p81 = scmp.ne.s32.totalorder %s69, %s70
      %p82 = scmp.eq.s32.totalorder %s25, 1
      %p83 = por %p81, %p82
      %p85 = scmp.ne.s32.totalorder %s70, %s84
      %p86 = scmp.eq.s32.totalorder %s25, 0
      %p87 = por %p85, %p86
      %s89 = sadd.s32 %s88, 1
      %p92 = scmp.eq.s32.totalorder %s19, 1
      %p93 = scmp.ne.s32.totalorder %s88, %s90
      %p94 = scmp.eq.s32.totalorder %s19, 0
      %p95 = por %p93, %p94
      %p96 = scmp.ne.s32.totalorder %s88, %s90
      %p97 = scmp.eq.s32.totalorder %s24, 1
      %p98 = por %p96, %p97
      %p99 = scmp.ne.s32.totalorder %s90, %s91
      %p100 = scmp.eq.s32.totalorder %s24, 0
      %p101 = por %p99, %p100
      %p102 = scmp.ne.s32.totalorder %s90, %s91
      %p103 = scmp.eq.s32.totalorder %s25, 1
      %p104 = por %p102, %p103
      %p106 = scmp.ne.s32.totalorder %s91, %s105
      %p107 = scmp.eq.s32.totalorder %s25, 0
      %p108 = por %p106, %p107
      %s110 = sadd.s32 %s109, 1
      %p113 = scmp.eq.s32.totalorder %s19, 1
      %p114 = scmp.ne.s32.totalorder %s109, %s111
      %p115 = scmp.eq.s32.totalorder %s19, 0
      %p116 = por %p114, %p115
      %p117 = scmp.ne.s32.totalorder %s109, %s111
      %p118 = scmp.eq.s32.totalorder %s24, 1
      %p119 = por %p117, %p118
      %p120 = scmp.ne.s32.totalorder %s111, %s112
      %p121 = scmp.eq.s32.totalorder %s24, 0
      %p122 = por %p120, %p121
      %p123 = scmp.ne.s32.totalorder %s111, %s112
      %p124 = scmp.eq.s32.totalorder %s25, 1
      %p125 = por %p123, %p124
      %p127 = scmp.ne.s32.totalorder %s112, %s126
      %p128 = scmp.eq.s32.totalorder %s25, 0
      %p129 = por %p127, %p128
      %s131 = sadd.s32 %s130, 1
      %p134 = scmp.eq.s32.totalorder %s19, 1
      %p135 = scmp.ne.s32.totalorder %s130, %s132
      %p136 = scmp.eq.s32.totalorder %s19, 0
      %p137 = por %p135, %p136
      %p138 = scmp.ne.s32.totalorder %s130, %s132
      %p139 = scmp.eq.s32.totalorder %s24, 1
      %p140 = por %p138, %p139
      %p141 = scmp.ne.s32.totalorder %s132, %s133
      %p142 = scmp.eq.s32.totalorder %s24, 0
      %p143 = por %p141, %p142
      %p144 = scmp.ne.s32.totalorder %s132, %s133
      %p145 = scmp.eq.s32.totalorder %s25, 1
      %p146 = por %p144, %p145
      %p148 = scmp.ne.s32.totalorder %s133, %s147
      %p149 = scmp.eq.s32.totalorder %s25, 0
      %p150 = por %p148, %p149
      %s152 = sadd.s32 %s151, 1
      %p155 = scmp.eq.s32.totalorder %s19, 1
      %p156 = scmp.ne.s32.totalorder %s151, %s153
      %p157 = scmp.eq.s32.totalorder %s19, 0
      %p158 = por %p156, %p157
      %p159 = scmp.ne.s32.totalorder %s151, %s153
      %p160 = scmp.eq.s32.totalorder %s24, 1
      %p161 = por %p159, %p160
      %p162 = scmp.ne.s32.totalorder %s153, %s154
      %p163 = scmp.eq.s32.totalorder %s24, 0
      %p164 = por %p162, %p163
      %p165 = scmp.ne.s32.totalorder %s153, %s154
      %p166 = scmp.eq.s32.totalorder %s25, 1
      %p167 = por %p165, %p166
      %p169 = scmp.ne.s32.totalorder %s154, %s168
      %p170 = scmp.eq.s32.totalorder %s25, 0
      %p171 = por %p169, %p170
      %s172 = ssub.s32 %s26, %s38
      %p173 = scmp.eq.s32.totalorder %s172, 0
      %s175 = sadd.s32 %s174, 1
      %s176 = scalar_select %p173, %s174, %s175
      %p179 = pneg %p173
      %p180 = scmp.eq.s32.totalorder %s19, 1
      %p181 = por %p179, %p180
      %p182 = scmp.ne.s32.totalorder %s174, %s177
      %p183 = scmp.eq.s32.totalorder %s19, 0
      %p184 = por %p182, %p183
      %p185 = scmp.ne.s32.totalorder %s174, %s177
      %p186 = scmp.eq.s32.totalorder %s24, 1
      %p187 = por %p185, %p186
      %p188 = scmp.ne.s32.totalorder %s177, %s178
      %p189 = scmp.eq.s32.totalorder %s24, 0
      %p190 = por %p188, %p189
      %p191 = scmp.ne.s32.totalorder %s177, %s178
      %p192 = scmp.eq.s32.totalorder %s25, 1
      %p193 = por %p191, %p192
      %p195 = scmp.ne.s32.totalorder %s178, %s194
      %p196 = scmp.eq.s32.totalorder %s25, 0
      %p197 = por %p195, %p196
      %p198 = scmp.le.s32.totalorder 1, %s19
      %p199 = scmp.lt.s32.totalorder %s19, 3
      %p200 = pnand %p198, %p199
      %p201 = pneg %p200
      // Predicated region
      $region9: #{vmamba_discriminator_forward.1} parent=5 // pred_check
        _
      $region10: #{vmamba_discriminator_forward.1} parent=5 // pred_check_branch
        %203 = sbr.rel (%p200) target = $region12
      $region11: #{vmamba_discriminator_forward.1} parent=5 // pred_region
        %s204 = ssub.s32 %s19, 1
        // Predicated region
        $region13: #{vmamba_discriminator_forward.1} parent=11 // pred_check
          %p205 = pneg %p80
        $region14: #{vmamba_discriminator_forward.1} parent=11 // pred_check_branch
          %207 = sbr.rel (%p205) target = $region16
        $region15: #{vmamba_discriminator_forward.1} parent=11 // pred_region
          %s209 = ssub.s32 2048, 2048
          %210 = vsyncadd [#allocation7], %s209
          %s211 = sshll.u32 [#allocation6], 4
          %s212 = int_to_ptr.vmem [resolvable:$true] %s211
          %217 = dma.hbm_to_vmem [thread:$0]  %s1, 2048, %s212, [#allocation7], 128, 128, 8
        $region16: #{vmamba_discriminator_forward.1} parent=11 // pred_fallthru
          _
        // Predicated region
        $region17: #{vmamba_discriminator_forward.1} parent=11 // pred_check
          %p218 = pneg %p101
        $region18: #{vmamba_discriminator_forward.1} parent=11 // pred_check_branch
          %220 = sbr.rel (%p218) target = $region20
        $region19: #{vmamba_discriminator_forward.1} parent=11 // pred_region
          %s222 = ssub.s32 1024, 1024
          %223 = vsyncadd [#allocation7], %s222
          %s224 = sshll.u32 [#allocation8], 4
          %s225 = int_to_ptr.vmem [resolvable:$true] %s224
          %230 = dma.hbm_to_vmem [thread:$0]  %s2, 1024, %s225, [#allocation7], 128, 128, 8
        $region20: #{vmamba_discriminator_forward.1} parent=11 // pred_fallthru
          _
        // Predicated region
        $region21: #{vmamba_discriminator_forward.1} parent=11 // pred_check
          %p231 = pneg %p122
        $region22: #{vmamba_discriminator_forward.1} parent=11 // pred_check_branch
          %233 = sbr.rel (%p231) target = $region24
        $region23: #{vmamba_discriminator_forward.1} parent=11 // pred_region
          %s235 = ssub.s32 16, 16
          %236 = vsyncadd [#allocation10], %s235
          %s238 = sshll.u32 [#allocation9], 4
          %s239 = int_to_ptr.vmem [resolvable:$true] %s238
          %241 = dma.hbm_to_vmem [thread:$0]  %s3, 16, %s239, [#allocation10]
        $region24: #{vmamba_discriminator_forward.1} parent=11 // pred_fallthru
          _
        // Predicated region
        $region25: #{vmamba_discriminator_forward.1} parent=11 // pred_check
          %p242 = pneg %p143
        $region26: #{vmamba_discriminator_forward.1} parent=11 // pred_check_branch
          %244 = sbr.rel (%p242) target = $region28
        $region27: #{vmamba_discriminator_forward.1} parent=11 // pred_region
          %s246 = ssub.s32 16, 16
          %247 = vsyncadd [#allocation10], %s246
          %s249 = sshll.u32 [#allocation11], 4
          %s250 = int_to_ptr.vmem [resolvable:$true] %s249
          %252 = dma.hbm_to_vmem [thread:$0]  %s4, 16, %s250, [#allocation10]
        $region28: #{vmamba_discriminator_forward.1} parent=11 // pred_fallthru
          _
        // Predicated region
        $region29: #{vmamba_discriminator_forward.1} parent=11 // pred_check
          %p253 = pneg %p164
        $region30: #{vmamba_discriminator_forward.1} parent=11 // pred_check_branch
          %255 = sbr.rel (%p253) target = $region32
        $region31: #{vmamba_discriminator_forward.1} parent=11 // pred_region
          %s257 = ssub.s32 16, 16
          %258 = vsyncadd [#allocation13], %s257
          %s260 = sshll.u32 [#allocation12], 4
          %s261 = int_to_ptr.vmem [resolvable:$true] %s260
          %263 = dma.hbm_to_vmem [thread:$0]  %s5, 16, %s261, [#allocation13]
        $region32: #{vmamba_discriminator_forward.1} parent=11 // pred_fallthru
          _
      $region12: #{vmamba_discriminator_forward.1} parent=5 // pred_fallthru
        _
      %p264 = scmp.lt.s32.totalorder %s19, 2
      // Predicated region
      $region33: #{vmamba_discriminator_forward.1} parent=5 // pred_check
        %p265 = pneg %p264
      $region34: #{vmamba_discriminator_forward.1} parent=5 // pred_check_branch
        %267 = sbr.rel (%p265) target = $region36
      $region35: #{vmamba_discriminator_forward.1} parent=5 // pred_region
        // Predicated region
        $region37: #{vmamba_discriminator_forward.1} parent=35 // pred_check
          %p268 = pneg %p53
        $region38: #{vmamba_discriminator_forward.1} parent=35 // pred_check_branch
          %270 = sbr.rel (%p268) target = $region40
        $region39: #{vmamba_discriminator_forward.1} parent=35 // pred_region
          %s271 = sand.u32 %s43, 1
          %s272 = scalar_lea.sflag [#allocation4], %s271
          %s273 = sand.u32 %s43, 1
          %s274 = smul.addr %s273, 8
          %s275 = scalar_lea.vmem [#allocation3], %s274
          %s276 = smul.u32 2, %s26
          %s278 = ssub.s32 128, 128
          %279 = vsyncadd %s272, %s278
          %s280 = smul.addr %s276, 2
          %s281 = sadd.s32 %s27, %s280
          %s282 = smul.addr %s281, 64
          %s283 = scalar_lea.hbm %s0, %s282
          %s284 = sshll.u32 %s275, 4
          %s285 = int_to_ptr.vmem [resolvable:$true] %s284
          %290 = dma.hbm_to_vmem [thread:$0]  %s283, 128, %s285, %s272, 128, 64, 4
        $region40: #{vmamba_discriminator_forward.1} parent=35 // pred_fallthru
          _
      $region36: #{vmamba_discriminator_forward.1} parent=5 // pred_fallthru
        _
      %p291 = scmp.le.s32.totalorder 1, %s19
      %p292 = scmp.lt.s32.totalorder %s19, 3
      %p293 = pnand %p291, %p292
      %p294 = pneg %p293
      // Predicated region
      $region41: #{vmamba_discriminator_forward.1} parent=5 // pred_check
        _
      $region42: #{vmamba_discriminator_forward.1} parent=5 // pred_check_branch
        %296 = sbr.rel (%p293) target = $region44
      $region43: #{vmamba_discriminator_forward.1} parent=5 // pred_region
        %s297 = ssub.s32 %s19, 1
        %s298 = sand.u32 %s46, 1
        %s299 = scalar_lea.sflag [#allocation4], %s298
        %s300 = sand.u32 %s46, 1
        %s301 = smul.addr %s300, 8
        %s302 = scalar_lea.vmem [#allocation3], %s301
        // Predicated region
        $region45: #{vmamba_discriminator_forward.1} parent=43 // pred_check
          %p303 = pneg %p59
        $region46: #{vmamba_discriminator_forward.1} parent=43 // pred_check_branch
          %305 = sbr.rel (%p303) target = $region48
        $region47: #{vmamba_discriminator_forward.1} parent=43 // pred_region
          %306 = dma.done %s299, 128
        $region48: #{vmamba_discriminator_forward.1} parent=43 // pred_fallthru
          _
        // Predicated region
        $region49: #{vmamba_discriminator_forward.1} parent=43 // pred_check
          %p307 = pneg %p80
        $region50: #{vmamba_discriminator_forward.1} parent=43 // pred_check_branch
          %309 = sbr.rel (%p307) target = $region52
        $region51: #{vmamba_discriminator_forward.1} parent=43 // pred_region
          %310 = dma.done [#allocation7], 2048
        $region52: #{vmamba_discriminator_forward.1} parent=43 // pred_fallthru
          _
        // Predicated region
        $region53: #{vmamba_discriminator_forward.1} parent=43 // pred_check
          %p311 = pneg %p101
        $region54: #{vmamba_discriminator_forward.1} parent=43 // pred_check_branch
          %313 = sbr.rel (%p311) target = $region56
        $region55: #{vmamba_discriminator_forward.1} parent=43 // pred_region
          %314 = dma.done [#allocation7], 1024
        $region56: #{vmamba_discriminator_forward.1} parent=43 // pred_fallthru
          _
        // Predicated region
        $region57: #{vmamba_discriminator_forward.1} parent=43 // pred_check
          %p315 = pneg %p122
        $region58: #{vmamba_discriminator_forward.1} parent=43 // pred_check_branch
          %317 = sbr.rel (%p315) target = $region60
        $region59: #{vmamba_discriminator_forward.1} parent=43 // pred_region
          %318 = dma.done [#allocation10], 16
        $region60: #{vmamba_discriminator_forward.1} parent=43 // pred_fallthru
          _
        // Predicated region
        $region61: #{vmamba_discriminator_forward.1} parent=43 // pred_check
          %p319 = pneg %p143
        $region62: #{vmamba_discriminator_forward.1} parent=43 // pred_check_branch
          %321 = sbr.rel (%p319) target = $region64
        $region63: #{vmamba_discriminator_forward.1} parent=43 // pred_region
          %322 = dma.done [#allocation10], 16
        $region64: #{vmamba_discriminator_forward.1} parent=43 // pred_fallthru
          _
        // Predicated region
        $region65: #{vmamba_discriminator_forward.1} parent=43 // pred_check
          %p323 = pneg %p164
        $region66: #{vmamba_discriminator_forward.1} parent=43 // pred_check_branch
          %325 = sbr.rel (%p323) target = $region68
        $region67: #{vmamba_discriminator_forward.1} parent=43 // pred_region
          %326 = dma.done [#allocation13], 16
        $region68: #{vmamba_discriminator_forward.1} parent=43 // pred_fallthru
          _
        %s327 = sand.u32 %s46, 1
        %s328 = scalar_lea.sflag [#allocation4], %s327
        %s329 = sand.u32 %s46, 1
        %s330 = smul.addr %s329, 8
        %s331 = scalar_lea.vmem [#allocation3], %s330
        %p332 = pneg %p59
        %p333 = pneg %p56
        %p334 = pneg %p80
        %p335 = pneg %p77
        %p336 = pneg %p101
        %p337 = pneg %p98
        %p338 = pneg %p122
        %p339 = pneg %p119
        %p340 = pneg %p143
        %p341 = pneg %p140
        %p342 = pneg %p164
        %p343 = pneg %p161
        %p344 = pneg %p190
        %p345 = pneg %p187
        %s346 = smul.u32 2, %s28
        %p347 = scmp.eq.s32.totalorder %s29, 0
        // Predicated region
        $region69: #{vmamba_discriminator_forward.1} parent=43 // pred_check
          %p348 = pneg %p347
        $region70: #{vmamba_discriminator_forward.1} parent=43 // pred_check_branch
          %350 = sbr.rel (%p348) target = $region72
        $region71: #{vmamba_discriminator_forward.1} parent=43 // pred_region
          %351 = vst [vmem:[#allocation2] sm:$0xf] 0.0
          %352 = vst [vmem:[#allocation2 + $0x4] sm:$0xf] 0.0
        $region72: #{vmamba_discriminator_forward.1} parent=43 // pred_fallthru
          _
        %v353 = vld [vmem:[#allocation2] sm:$0xf]
        %v354 = vld [vmem:[#allocation2 + $0x4] sm:$0xf]
        %v355 = vld [vmem:[%s302] sm:$0xf]
        %v356 = vld [vmem:[%s302 + $0x4] sm:$0xf]
        %v357 = vadd.f32 %v353, %v355
        %v358 = vadd.f32 %v354, %v356
        %359 = vst [vmem:[#allocation2] sm:$0xf] %v357
        %360 = vst [vmem:[#allocation2 + $0x4] sm:$0xf] %v358
        %p361 = scmp.eq.s32.totalorder %s29, 1
        // Predicated region
        $region73: #{vmamba_discriminator_forward.1} parent=43 // pred_check
          %p362 = pneg %p361
        $region74: #{vmamba_discriminator_forward.1} parent=43 // pred_check_branch
          %364 = sbr.rel (%p362) target = $region76
        $region75: #{vmamba_discriminator_forward.1} parent=43 // pred_region
          %v365 = vld [vmem:[#allocation2] sm:$0x1]
          %v366 = vld [vmem:[#allocation2 + $0x4] sm:$0x1]
          %v367 = vld [vmem:[#allocation6] sm:$0xff]
          %v368 = vld [vmem:[#allocation6 + $0x8] sm:$0xff]
          %v369 = vld [vmem:[#allocation6 + $0x10] sm:$0xff]
          %v370 = vld [vmem:[#allocation6 + $0x18] sm:$0xff]
          %v371 = vld [vmem:[#allocation6 + $0x20] sm:$0xff]
          %v372 = vld [vmem:[#allocation6 + $0x28] sm:$0xff]
          %v373 = vld [vmem:[#allocation6 + $0x30] sm:$0xff]
          %v374 = vld [vmem:[#allocation6 + $0x38] sm:$0xff]
          %v375 = vld [vmem:[#allocation6 + $0x40] sm:$0xff]
          %v376 = vld [vmem:[#allocation6 + $0x48] sm:$0xff]
          %v377 = vld [vmem:[#allocation6 + $0x50] sm:$0xff]
          %v378 = vld [vmem:[#allocation6 + $0x58] sm:$0xff]
          %v379 = vld [vmem:[#allocation6 + $0x60] sm:$0xff]
          %v380 = vld [vmem:[#allocation6 + $0x68] sm:$0xff]
          %v381 = vld [vmem:[#allocation6 + $0x70] sm:$0xff]
          %v382 = vld [vmem:[#allocation6 + $0x78] sm:$0xff]
          %v385 = vrot.slane %v366, 7
          %vm386 = vcmask 1041409
          %v387 = vsel %vm386, %v385, %v365
          %389 = vmatprep.subr.mxu0 0.0
          %390 = vmatpush1.msra.mxu0 %v367
          %391 = vmatprep.subr.mxu0 0.0
          %392 = vmatpush1.msra.mxu0 %v368
          %393 = vmatprep.subr.mxu0 0.0
          %394 = vmatpush1.msra.mxu0 %v369
          %395 = vmatprep.subr.mxu0 0.0
          %396 = vmatpush1.msra.mxu0 %v370
          %397 = vmatprep.subr.mxu0 0.0
          %398 = vmatpush1.msra.mxu0 %v371
          %399 = vmatprep.subr.mxu0 0.0
          %400 = vmatpush1.msra.mxu0 %v372
          %401 = vmatprep.subr.mxu0 0.0
          %402 = vmatpush1.msra.mxu0 %v373
          %403 = vmatprep.subr.mxu0 0.0
          %404 = vmatpush1.msra.mxu0 %v374
          %405 = vmatprep.subr.mxu0 0.0
          %406 = vmatpush1.msra.mxu0 %v375
          %407 = vmatprep.subr.mxu0 0.0
          %408 = vmatpush1.msra.mxu0 %v376
          %409 = vmatprep.subr.mxu0 0.0
          %410 = vmatpush1.msra.mxu0 %v377
          %411 = vmatprep.subr.mxu0 0.0
          %412 = vmatpush1.msra.mxu0 %v378
          %413 = vmatprep.subr.mxu0 0.0
          %414 = vmatpush1.msra.mxu0 %v379
          %415 = vmatprep.subr.mxu0 0.0
          %416 = vmatpush1.msra.mxu0 %v380
          %417 = vmatprep.subr.mxu0 0.0
          %418 = vmatpush1.msra.mxu0 %v381
          %419 = vmatprep.subr.mxu0 0.0
          %420 = vmatpush1.msra.mxu0 %v382
          %421 = vmatprep.subr.mxu0 0.0
          %422 = vmatpush1.msra.mxu0 0.0
          %423 = vmatprep.subr.mxu0 0.0
          %424 = vmatpush1.msra.mxu0 0.0
          %425 = vmatprep.subr.mxu0 0.0
          %426 = vmatpush1.msra.mxu0 0.0
          %427 = vmatprep.subr.mxu0 0.0
          %428 = vmatpush1.msra.mxu0 0.0
          %429 = vmatprep.subr.mxu0 0.0
          %430 = vmatpush1.msra.mxu0 0.0
          %431 = vmatprep.subr.mxu0 0.0
          %432 = vmatpush1.msra.mxu0 0.0
          %433 = vmatprep.subr.mxu0 0.0
          %434 = vmatpush1.msra.mxu0 0.0
          %435 = vmatprep.subr.mxu0 0.0
          %436 = vmatpush1.msra.mxu0 0.0
          %437 = vmatprep.subr.mxu0 0.0
          %438 = vmatpush1.msra.mxu0 0.0
          %439 = vmatprep.subr.mxu0 0.0
          %440 = vmatpush1.msra.mxu0 0.0
          %441 = vmatprep.subr.mxu0 0.0
          %442 = vmatpush1.msra.mxu0 0.0
          %443 = vmatprep.subr.mxu0 0.0
          %444 = vmatpush1.msra.mxu0 0.0
          %445 = vmatprep.subr.mxu0 0.0
          %446 = vmatpush1.msra.mxu0 0.0
          %447 = vmatprep.subr.mxu0 0.0
          %448 = vmatpush1.msra.mxu0 0.0
          %449 = vmatprep.subr.mxu0 0.0
          %450 = vmatpush1.msra.mxu0 0.0
          %451 = vmatprep.subr.mxu0 0.0
          %452 = vmatpush1.msra.mxu0 0.0
          %453 = vmatprep.mubr.f32.mxu0 0.0
          %454 = vmatmul.mubr.f32.gmra.mrb[0].mxu0 %v387
          %v455 = vpop.f32.mrb[0].mxu0
          %v456 = vadd.f32 0.0, %v455
          %v457 = vpop.f32.mrb[0].mxu0
          %458 = vdwg.mxu0
          %v459 = vld [vmem:[#allocation8] sm:$0xff]
          %v460 = vld [vmem:[#allocation8 + $0x8] sm:$0xff]
          %v461 = vld [vmem:[#allocation2 + $0x1] sm:$0x1]
          %v462 = vld [vmem:[#allocation2 + $0x5] sm:$0x1]
          %v465 = vrot.slane %v462, 7
          %v466 = vsel %vm386, %v465, %v461
          %468 = vmatprep.subr.mxu0 0.0
          %469 = vmatpush1.msra.mxu0 %v367
          %470 = vmatprep.subr.mxu0 0.0
          %471 = vmatpush1.msra.mxu0 %v368
          %472 = vmatprep.subr.mxu0 0.0
          %473 = vmatpush1.msra.mxu0 %v369
          %474 = vmatprep.subr.mxu0 0.0
          %475 = vmatpush1.msra.mxu0 %v370
          %476 = vmatprep.subr.mxu0 0.0
          %477 = vmatpush1.msra.mxu0 %v371
          %478 = vmatprep.subr.mxu0 0.0
          %479 = vmatpush1.msra.mxu0 %v372
          %480 = vmatprep.subr.mxu0 0.0
          %481 = vmatpush1.msra.mxu0 %v373
          %482 = vmatprep.subr.mxu0 0.0
          %483 = vmatpush1.msra.mxu0 %v374
          %484 = vmatprep.subr.mxu0 0.0
          %485 = vmatpush1.msra.mxu0 %v375
          %486 = vmatprep.subr.mxu0 0.0
          %487 = vmatpush1.msra.mxu0 %v376
          %488 = vmatprep.subr.mxu0 0.0
          %489 = vmatpush1.msra.mxu0 %v377
          %490 = vmatprep.subr.mxu0 0.0
          %491 = vmatpush1.msra.mxu0 %v378
          %492 = vmatprep.subr.mxu0 0.0
          %493 = vmatpush1.msra.mxu0 %v379
          %494 = vmatprep.subr.mxu0 0.0
          %495 = vmatpush1.msra.mxu0 %v380
          %496 = vmatprep.subr.mxu0 0.0
          %497 = vmatpush1.msra.mxu0 %v381
          %498 = vmatprep.subr.mxu0 0.0
          %499 = vmatpush1.msra.mxu0 %v382
          %500 = vmatprep.subr.mxu0 0.0
          %501 = vmatpush1.msra.mxu0 0.0
          %502 = vmatprep.subr.mxu0 0.0
          %503 = vmatpush1.msra.mxu0 0.0
          %504 = vmatprep.subr.mxu0 0.0
          %505 = vmatpush1.msra.mxu0 0.0
          %506 = vmatprep.subr.mxu0 0.0
          %507 = vmatpush1.msra.mxu0 0.0
          %508 = vmatprep.subr.mxu0 0.0
          %509 = vmatpush1.msra.mxu0 0.0
          %510 = vmatprep.subr.mxu0 0.0
          %511 = vmatpush1.msra.mxu0 0.0
          %512 = vmatprep.subr.mxu0 0.0
          %513 = vmatpush1.msra.mxu0 0.0
          %514 = vmatprep.subr.mxu0 0.0
          %515 = vmatpush1.msra.mxu0 0.0
          %516 = vmatprep.subr.mxu0 0.0
          %517 = vmatpush1.msra.mxu0 0.0
          %518 = vmatprep.subr.mxu0 0.0
          %519 = vmatpush1.msra.mxu0 0.0
          %520 = vmatprep.subr.mxu0 0.0
          %521 = vmatpush1.msra.mxu0 0.0
          %522 = vmatprep.subr.mxu0 0.0
          %523 = vmatpush1.msra.mxu0 0.0
          %524 = vmatprep.subr.mxu0 0.0
          %525 = vmatpush1.msra.mxu0 0.0
          %526 = vmatprep.subr.mxu0 0.0
          %527 = vmatpush1.msra.mxu0 0.0
          %528 = vmatprep.subr.mxu0 0.0
          %529 = vmatpush1.msra.mxu0 0.0
          %530 = vmatprep.subr.mxu0 0.0
          %531 = vmatpush1.msra.mxu0 0.0
          %532 = vmatprep.mubr.f32.mxu0 0.0
          %533 = vmatmul.mubr.f32.gmra.mrb[0].mxu0 %v466
          %v534 = vpop.f32.mrb[0].mxu0
          %v535 = vadd.f32 0.0, %v534
          %v536 = vpop.f32.mrb[0].mxu0
          %537 = vdwg.mxu0
          %s538 = scalar_lea.vmem [#allocation8], 16
          %v539 = vld [vmem:[%s538] sm:$0xff]
          %v540 = vld [vmem:[%s538 + $0x8] sm:$0xff]
          %vm541 = vcmask 130048
          %v543 = vsel %vm541, %v535, 0
          %545 = vmatprep.subr.mxu0 0.0
          %546 = vmatpush1.msra.mxu0 %v539
          %547 = vmatprep.subr.mxu0 0.0
          %548 = vmatpush1.msra.mxu0 %v540
          %549 = vmatprep.subr.mxu0 0.0
          %550 = vmatpush1.msra.mxu0 0.0
          %551 = vmatprep.subr.mxu0 0.0
          %552 = vmatpush1.msra.mxu0 0.0
          %553 = vmatprep.subr.mxu0 0.0
          %554 = vmatpush1.msra.mxu0 0.0
          %555 = vmatprep.subr.mxu0 0.0
          %556 = vmatpush1.msra.mxu0 0.0
          %557 = vmatprep.subr.mxu0 0.0
          %558 = vmatpush1.msra.mxu0 0.0
          %559 = vmatprep.subr.mxu0 0.0
          %560 = vmatpush1.msra.mxu0 0.0
          %561 = vmatprep.subr.mxu0 0.0
          %562 = vmatpush1.msra.mxu0 0.0
          %563 = vmatprep.subr.mxu0 0.0
          %564 = vmatpush1.msra.mxu0 0.0
          %565 = vmatprep.subr.mxu0 0.0
          %566 = vmatpush1.msra.mxu0 0.0
          %567 = vmatprep.subr.mxu0 0.0
          %568 = vmatpush1.msra.mxu0 0.0
          %569 = vmatprep.subr.mxu0 0.0
          %570 = vmatpush1.msra.mxu0 0.0
          %571 = vmatprep.subr.mxu0 0.0
          %572 = vmatpush1.msra.mxu0 0.0
          %573 = vmatprep.subr.mxu0 0.0
          %574 = vmatpush1.msra.mxu0 0.0
          %575 = vmatprep.subr.mxu0 0.0
          %576 = vmatpush1.msra.mxu0 0.0
          %577 = vmatprep.subr.mxu0 0.0
          %578 = vmatpush1.msra.mxu0 0.0
          %579 = vmatprep.subr.mxu0 0.0
          %580 = vmatpush1.msra.mxu0 0.0
          %581 = vmatprep.subr.mxu0 0.0
          %582 = vmatpush1.msra.mxu0 0.0
          %583 = vmatprep.subr.mxu0 0.0
          %584 = vmatpush1.msra.mxu0 0.0
          %585 = vmatprep.subr.mxu0 0.0
          %586 = vmatpush1.msra.mxu0 0.0
          %587 = vmatprep.subr.mxu0 0.0
          %588 = vmatpush1.msra.mxu0 0.0
          %589 = vmatprep.subr.mxu0 0.0
          %590 = vmatpush1.msra.mxu0 0.0
          %591 = vmatprep.subr.mxu0 0.0
          %592 = vmatpush1.msra.mxu0 0.0
          %593 = vmatprep.subr.mxu0 0.0
          %594 = vmatpush1.msra.mxu0 0.0
          %595 = vmatprep.subr.mxu0 0.0
          %596 = vmatpush1.msra.mxu0 0.0
          %597 = vmatprep.subr.mxu0 0.0
          %598 = vmatpush1.msra.mxu0 0.0
          %599 = vmatprep.subr.mxu0 0.0
          %600 = vmatpush1.msra.mxu0 0.0
          %601 = vmatprep.subr.mxu0 0.0
          %602 = vmatpush1.msra.mxu0 0.0
          %603 = vmatprep.subr.mxu0 0.0
          %604 = vmatpush1.msra.mxu0 0.0
          %605 = vmatprep.subr.mxu0 0.0
          %606 = vmatpush1.msra.mxu0 0.0
          %607 = vmatprep.subr.mxu0 0.0
          %608 = vmatpush1.msra.mxu0 0.0
          %609 = vmatprep.mubr.f32.mxu0 0.0
          %610 = vmatmul.mubr.f32.gmra.mrb[0].mxu0 %v543
          %v611 = vpop.f32.mrb[0].mxu0
          %v612 = vadd.f32 0.0, %v611
          %v613 = vpop.f32.mrb[0].mxu0
          %614 = vdwg.mxu0
          %v616 = vsel %vm541, %v456, 0
          %618 = vmatprep.subr.mxu0 0.0
          %619 = vmatpush1.msra.mxu0 %v459
          %620 = vmatprep.subr.mxu0 0.0
          %621 = vmatpush1.msra.mxu0 %v460
          %622 = vmatprep.subr.mxu0 0.0
          %623 = vmatpush1.msra.mxu0 0.0
          %624 = vmatprep.subr.mxu0 0.0
          %625 = vmatpush1.msra.mxu0 0.0
          %626 = vmatprep.subr.mxu0 0.0
          %627 = vmatpush1.msra.mxu0 0.0
          %628 = vmatprep.subr.mxu0 0.0
          %629 = vmatpush1.msra.mxu0 0.0
          %630 = vmatprep.subr.mxu0 0.0
          %631 = vmatpush1.msra.mxu0 0.0
          %632 = vmatprep.subr.mxu0 0.0
          %633 = vmatpush1.msra.mxu0 0.0
          %634 = vmatprep.subr.mxu0 0.0
          %635 = vmatpush1.msra.mxu0 0.0
          %636 = vmatprep.subr.mxu0 0.0
          %637 = vmatpush1.msra.mxu0 0.0
          %638 = vmatprep.subr.mxu0 0.0
          %639 = vmatpush1.msra.mxu0 0.0
          %640 = vmatprep.subr.mxu0 0.0
          %641 = vmatpush1.msra.mxu0 0.0
          %642 = vmatprep.subr.mxu0 0.0
          %643 = vmatpush1.msra.mxu0 0.0
          %644 = vmatprep.subr.mxu0 0.0
          %645 = vmatpush1.msra.mxu0 0.0
          %646 = vmatprep.subr.mxu0 0.0
          %647 = vmatpush1.msra.mxu0 0.0
          %648 = vmatprep.subr.mxu0 0.0
          %649 = vmatpush1.msra.mxu0 0.0
          %650 = vmatprep.subr.mxu0 0.0
          %651 = vmatpush1.msra.mxu0 0.0
          %652 = vmatprep.subr.mxu0 0.0
          %653 = vmatpush1.msra.mxu0 0.0
          %654 = vmatprep.subr.mxu0 0.0
          %655 = vmatpush1.msra.mxu0 0.0
          %656 = vmatprep.subr.mxu0 0.0
          %657 = vmatpush1.msra.mxu0 0.0
          %658 = vmatprep.subr.mxu0 0.0
          %659 = vmatpush1.msra.mxu0 0.0
          %660 = vmatprep.subr.mxu0 0.0
          %661 = vmatpush1.msra.mxu0 0.0
          %662 = vmatprep.subr.mxu0 0.0
          %663 = vmatpush1.msra.mxu0 0.0
          %664 = vmatprep.subr.mxu0 0.0
          %665 = vmatpush1.msra.mxu0 0.0
          %666 = vmatprep.subr.mxu0 0.0
          %667 = vmatpush1.msra.mxu0 0.0
          %668 = vmatprep.subr.mxu0 0.0
          %669 = vmatpush1.msra.mxu0 0.0
          %670 = vmatprep.subr.mxu0 0.0
          %671 = vmatpush1.msra.mxu0 0.0
          %672 = vmatprep.subr.mxu0 0.0
          %673 = vmatpush1.msra.mxu0 0.0
          %674 = vmatprep.subr.mxu0 0.0
          %675 = vmatpush1.msra.mxu0 0.0
          %676 = vmatprep.subr.mxu0 0.0
          %677 = vmatpush1.msra.mxu0 0.0
          %678 = vmatprep.subr.mxu0 0.0
          %679 = vmatpush1.msra.mxu0 0.0
          %680 = vmatprep.subr.mxu0 0.0
          %681 = vmatpush1.msra.mxu0 0.0
          %682 = vmatprep.mubr.f32.mxu0 0.0
          %683 = vmatmul.mubr.f32.gmra.mrb[0].mxu0 %v616
          %v684 = vpop.f32.mrb[0].mxu0
          %v685 = vadd.f32 %v612, %v684
          %v686 = vpop.f32.mrb[0].mxu0
          %687 = vdwg.mxu0
          %v688 = vld [vmem:[#allocation2 + $0x2] sm:$0x1]
          %v689 = vld [vmem:[#allocation2 + $0x6] sm:$0x1]
          %v692 = vrot.slane %v689, 7
          %v693 = vsel %vm386, %v692, %v688
          %695 = vmatprep.subr.mxu0 0.0
          %696 = vmatpush1.msra.mxu0 %v367
          %697 = vmatprep.subr.mxu0 0.0
          %698 = vmatpush1.msra.mxu0 %v368
          %699 = vmatprep.subr.mxu0 0.0
          %700 = vmatpush1.msra.mxu0 %v369
          %701 = vmatprep.subr.mxu0 0.0
          %702 = vmatpush1.msra.mxu0 %v370
          %703 = vmatprep.subr.mxu0 0.0
          %704 = vmatpush1.msra.mxu0 %v371
          %705 = vmatprep.subr.mxu0 0.0
          %706 = vmatpush1.msra.mxu0 %v372
          %707 = vmatprep.subr.mxu0 0.0
          %708 = vmatpush1.msra.mxu0 %v373
          %709 = vmatprep.subr.mxu0 0.0
          %710 = vmatpush1.msra.mxu0 %v374
          %711 = vmatprep.subr.mxu0 0.0
          %712 = vmatpush1.msra.mxu0 %v375
          %713 = vmatprep.subr.mxu0 0.0
          %714 = vmatpush1.msra.mxu0 %v376
          %715 = vmatprep.subr.mxu0 0.0
          %716 = vmatpush1.msra.mxu0 %v377
          %717 = vmatprep.subr.mxu0 0.0
          %718 = vmatpush1.msra.mxu0 %v378
          %719 = vmatprep.subr.mxu0 0.0
          %720 = vmatpush1.msra.mxu0 %v379
          %721 = vmatprep.subr.mxu0 0.0
          %722 = vmatpush1.msra.mxu0 %v380
          %723 = vmatprep.subr.mxu0 0.0
          %724 = vmatpush1.msra.mxu0 %v381
          %725 = vmatprep.subr.mxu0 0.0
          %726 = vmatpush1.msra.mxu0 %v382
          %727 = vmatprep.subr.mxu0 0.0
          %728 = vmatpush1.msra.mxu0 0.0
          %729 = vmatprep.subr.mxu0 0.0
          %730 = vmatpush1.msra.mxu0 0.0
          %731 = vmatprep.subr.mxu0 0.0
          %732 = vmatpush1.msra.mxu0 0.0
          %733 = vmatprep.subr.mxu0 0.0
          %734 = vmatpush1.msra.mxu0 0.0
          %735 = vmatprep.subr.mxu0 0.0
          %736 = vmatpush1.msra.mxu0 0.0
          %737 = vmatprep.subr.mxu0 0.0
          %738 = vmatpush1.msra.mxu0 0.0
          %739 = vmatprep.subr.mxu0 0.0
          %740 = vmatpush1.msra.mxu0 0.0
          %741 = vmatprep.subr.mxu0 0.0
          %742 = vmatpush1.msra.mxu0 0.0
          %743 = vmatprep.subr.mxu0 0.0
          %744 = vmatpush1.msra.mxu0 0.0
          %745 = vmatprep.subr.mxu0 0.0
          %746 = vmatpush1.msra.mxu0 0.0
          %747 = vmatprep.subr.mxu0 0.0
          %748 = vmatpush1.msra.mxu0 0.0
          %749 = vmatprep.subr.mxu0 0.0
          %750 = vmatpush1.msra.mxu0 0.0
          %751 = vmatprep.subr.mxu0 0.0
          %752 = vmatpush1.msra.mxu0 0.0
          %753 = vmatprep.subr.mxu0 0.0
          %754 = vmatpush1.msra.mxu0 0.0
          %755 = vmatprep.subr.mxu0 0.0
          %756 = vmatpush1.msra.mxu0 0.0
          %757 = vmatprep.subr.mxu0 0.0
          %758 = vmatpush1.msra.mxu0 0.0
          %759 = vmatprep.mubr.f32.mxu0 0.0
          %760 = vmatmul.mubr.f32.gmra.mrb[0].mxu0 %v693
          %v761 = vpop.f32.mrb[0].mxu0
          %v762 = vadd.f32 0.0, %v761
          %v763 = vpop.f32.mrb[0].mxu0
          %764 = vdwg.mxu0
          %s765 = scalar_lea.vmem [#allocation8], 32
          %v766 = vld [vmem:[%s765] sm:$0xff]
          %v767 = vld [vmem:[%s765 + $0x8] sm:$0xff]
          %v769 = vsel %vm541, %v762, 0
          %771 = vmatprep.subr.mxu0 0.0
          %772 = vmatpush1.msra.mxu0 %v766
          %773 = vmatprep.subr.mxu0 0.0
          %774 = vmatpush1.msra.mxu0 %v767
          %775 = vmatprep.subr.mxu0 0.0
          %776 = vmatpush1.msra.mxu0 0.0
          %777 = vmatprep.subr.mxu0 0.0
          %778 = vmatpush1.msra.mxu0 0.0
          %779 = vmatprep.subr.mxu0 0.0
          %780 = vmatpush1.msra.mxu0 0.0
          %781 = vmatprep.subr.mxu0 0.0
          %782 = vmatpush1.msra.mxu0 0.0
          %783 = vmatprep.subr.mxu0 0.0
          %784 = vmatpush1.msra.mxu0 0.0
          %785 = vmatprep.subr.mxu0 0.0
          %786 = vmatpush1.msra.mxu0 0.0
          %787 = vmatprep.subr.mxu0 0.0
          %788 = vmatpush1.msra.mxu0 0.0
          %789 = vmatprep.subr.mxu0 0.0
          %790 = vmatpush1.msra.mxu0 0.0
          %791 = vmatprep.subr.mxu0 0.0
          %792 = vmatpush1.msra.mxu0 0.0
          %793 = vmatprep.subr.mxu0 0.0
          %794 = vmatpush1.msra.mxu0 0.0
          %795 = vmatprep.subr.mxu0 0.0
          %796 = vmatpush1.msra.mxu0 0.0
          %797 = vmatprep.subr.mxu0 0.0
          %798 = vmatpush1.msra.mxu0 0.0
          %799 = vmatprep.subr.mxu0 0.0
          %800 = vmatpush1.msra.mxu0 0.0
          %801 = vmatprep.subr.mxu0 0.0
          %802 = vmatpush1.msra.mxu0 0.0
          %803 = vmatprep.subr.mxu0 0.0
          %804 = vmatpush1.msra.mxu0 0.0
          %805 = vmatprep.subr.mxu0 0.0
          %806 = vmatpush1.msra.mxu0 0.0
          %807 = vmatprep.subr.mxu0 0.0
          %808 = vmatpush1.msra.mxu0 0.0
          %809 = vmatprep.subr.mxu0 0.0
          %810 = vmatpush1.msra.mxu0 0.0
          %811 = vmatprep.subr.mxu0 0.0
          %812 = vmatpush1.msra.mxu0 0.0
          %813 = vmatprep.subr.mxu0 0.0
          %814 = vmatpush1.msra.mxu0 0.0
          %815 = vmatprep.subr.mxu0 0.0
          %816 = vmatpush1.msra.mxu0 0.0
          %817 = vmatprep.subr.mxu0 0.0
          %818 = vmatpush1.msra.mxu0 0.0
          %819 = vmatprep.subr.mxu0 0.0
          %820 = vmatpush1.msra.mxu0 0.0
          %821 = vmatprep.subr.mxu0 0.0
          %822 = vmatpush1.msra.mxu0 0.0
          %823 = vmatprep.subr.mxu0 0.0
          %824 = vmatpush1.msra.mxu0 0.0
          %825 = vmatprep.subr.mxu0 0.0
          %826 = vmatpush1.msra.mxu0 0.0
          %827 = vmatprep.subr.mxu0 0.0
          %828 = vmatpush1.msra.mxu0 0.0
          %829 = vmatprep.subr.mxu0 0.0
          %830 = vmatpush1.msra.mxu0 0.0
          %831 = vmatprep.subr.mxu0 0.0
          %832 = vmatpush1.msra.mxu0 0.0
          %833 = vmatprep.subr.mxu0 0.0
          %834 = vmatpush1.msra.mxu0 0.0
          %835 = vmatprep.mubr.f32.mxu0 0.0
          %836 = vmatmul.mubr.f32.gmra.mrb[0].mxu0 %v769
          %v837 = vpop.f32.mrb[0].mxu0
          %v838 = vadd.f32 0.0, %v837
          %v839 = vpop.f32.mrb[0].mxu0
          %840 = vdwg.mxu0
          %v841 = vadd.f32 %v685, %v838
          %v842 = vld [vmem:[#allocation2 + $0x3] sm:$0x1]
          %v843 = vld [vmem:[#allocation2 + $0x7] sm:$0x1]
          %v846 = vrot.slane %v843, 7
          %v847 = vsel %vm386, %v846, %v842
          %849 = vmatprep.subr.mxu0 0.0
          %850 = vmatpush1.msra.mxu0 %v367
          %851 = vmatprep.subr.mxu0 0.0
          %852 = vmatpush1.msra.mxu0 %v368
          %853 = vmatprep.subr.mxu0 0.0
          %854 = vmatpush1.msra.mxu0 %v369
          %855 = vmatprep.subr.mxu0 0.0
          %856 = vmatpush1.msra.mxu0 %v370
          %857 = vmatprep.subr.mxu0 0.0
          %858 = vmatpush1.msra.mxu0 %v371
          %859 = vmatprep.subr.mxu0 0.0
          %860 = vmatpush1.msra.mxu0 %v372
          %861 = vmatprep.subr.mxu0 0.0
          %862 = vmatpush1.msra.mxu0 %v373
          %863 = vmatprep.subr.mxu0 0.0
          %864 = vmatpush1.msra.mxu0 %v374
          %865 = vmatprep.subr.mxu0 0.0
          %866 = vmatpush1.msra.mxu0 %v375
          %867 = vmatprep.subr.mxu0 0.0
          %868 = vmatpush1.msra.mxu0 %v376
          %869 = vmatprep.subr.mxu0 0.0
          %870 = vmatpush1.msra.mxu0 %v377
          %871 = vmatprep.subr.mxu0 0.0
          %872 = vmatpush1.msra.mxu0 %v378
          %873 = vmatprep.subr.mxu0 0.0
          %874 = vmatpush1.msra.mxu0 %v379
          %875 = vmatprep.subr.mxu0 0.0
          %876 = vmatpush1.msra.mxu0 %v380
          %877 = vmatprep.subr.mxu0 0.0
          %878 = vmatpush1.msra.mxu0 %v381
          %879 = vmatprep.subr.mxu0 0.0
          %880 = vmatpush1.msra.mxu0 %v382
          %881 = vmatprep.subr.mxu0 0.0
          %882 = vmatpush1.msra.mxu0 0.0
          %883 = vmatprep.subr.mxu0 0.0
          %884 = vmatpush1.msra.mxu0 0.0
          %885 = vmatprep.subr.mxu0 0.0
          %886 = vmatpush1.msra.mxu0 0.0
          %887 = vmatprep.subr.mxu0 0.0
          %888 = vmatpush1.msra.mxu0 0.0
          %889 = vmatprep.subr.mxu0 0.0
          %890 = vmatpush1.msra.mxu0 0.0
          %891 = vmatprep.subr.mxu0 0.0
          %892 = vmatpush1.msra.mxu0 0.0
          %893 = vmatprep.subr.mxu0 0.0
          %894 = vmatpush1.msra.mxu0 0.0
          %895 = vmatprep.subr.mxu0 0.0
          %896 = vmatpush1.msra.mxu0 0.0
          %897 = vmatprep.subr.mxu0 0.0
          %898 = vmatpush1.msra.mxu0 0.0
          %899 = vmatprep.subr.mxu0 0.0
          %900 = vmatpush1.msra.mxu0 0.0
          %901 = vmatprep.subr.mxu0 0.0
          %902 = vmatpush1.msra.mxu0 0.0
          %903 = vmatprep.subr.mxu0 0.0
          %904 = vmatpush1.msra.mxu0 0.0
          %905 = vmatprep.subr.mxu0 0.0
          %906 = vmatpush1.msra.mxu0 0.0
          %907 = vmatprep.subr.mxu0 0.0
          %908 = vmatpush1.msra.mxu0 0.0
          %909 = vmatprep.subr.mxu0 0.0
          %910 = vmatpush1.msra.mxu0 0.0
          %911 = vmatprep.subr.mxu0 0.0
          %912 = vmatpush1.msra.mxu0 0.0
          %913 = vmatprep.mubr.f32.mxu0 0.0
          %914 = vmatmul.mubr.f32.gmra.mrb[0].mxu0 %v847
          %v915 = vpop.f32.mrb[0].mxu0
          %v916 = vadd.f32 0.0, %v915
          %v917 = vpop.f32.mrb[0].mxu0
          %918 = vdwg.mxu0
          %s919 = scalar_lea.vmem [#allocation8], 48
          %v920 = vld [vmem:[%s919] sm:$0xff]
          %v921 = vld [vmem:[%s919 + $0x8] sm:$0xff]
          %v923 = vsel %vm541, %v916, 0
          %925 = vmatprep.subr.mxu0 0.0
          %926 = vmatpush1.msra.mxu0 %v920
          %927 = vmatprep.subr.mxu0 0.0
          %928 = vmatpush1.msra.mxu0 %v921
          %929 = vmatprep.subr.mxu0 0.0
          %930 = vmatpush1.msra.mxu0 0.0
          %931 = vmatprep.subr.mxu0 0.0
          %932 = vmatpush1.msra.mxu0 0.0
          %933 = vmatprep.subr.mxu0 0.0
          %934 = vmatpush1.msra.mxu0 0.0
          %935 = vmatprep.subr.mxu0 0.0
          %936 = vmatpush1.msra.mxu0 0.0
          %937 = vmatprep.subr.mxu0 0.0
          %938 = vmatpush1.msra.mxu0 0.0
          %939 = vmatprep.subr.mxu0 0.0
          %940 = vmatpush1.msra.mxu0 0.0
          %941 = vmatprep.subr.mxu0 0.0
          %942 = vmatpush1.msra.mxu0 0.0
          %943 = vmatprep.subr.mxu0 0.0
          %944 = vmatpush1.msra.mxu0 0.0
          %945 = vmatprep.subr.mxu0 0.0
          %946 = vmatpush1.msra.mxu0 0.0
          %947 = vmatprep.subr.mxu0 0.0
          %948 = vmatpush1.msra.mxu0 0.0
          %949 = vmatprep.subr.mxu0 0.0
          %950 = vmatpush1.msra.mxu0 0.0
          %951 = vmatprep.subr.mxu0 0.0
          %952 = vmatpush1.msra.mxu0 0.0
          %953 = vmatprep.subr.mxu0 0.0
          %954 = vmatpush1.msra.mxu0 0.0
          %955 = vmatprep.subr.mxu0 0.0
          %956 = vmatpush1.msra.mxu0 0.0
          %957 = vmatprep.subr.mxu0 0.0
          %958 = vmatpush1.msra.mxu0 0.0
          %959 = vmatprep.subr.mxu0 0.0
          %960 = vmatpush1.msra.mxu0 0.0
          %961 = vmatprep.subr.mxu0 0.0
          %962 = vmatpush1.msra.mxu0 0.0
          %963 = vmatprep.subr.mxu0 0.0
          %964 = vmatpush1.msra.mxu0 0.0
          %965 = vmatprep.subr.mxu0 0.0
          %966 = vmatpush1.msra.mxu0 0.0
          %967 = vmatprep.subr.mxu0 0.0
          %968 = vmatpush1.msra.mxu0 0.0
          %969 = vmatprep.subr.mxu0 0.0
          %970 = vmatpush1.msra.mxu0 0.0
          %971 = vmatprep.subr.mxu0 0.0
          %972 = vmatpush1.msra.mxu0 0.0
          %973 = vmatprep.subr.mxu0 0.0
          %974 = vmatpush1.msra.mxu0 0.0
          %975 = vmatprep.subr.mxu0 0.0
          %976 = vmatpush1.msra.mxu0 0.0
          %977 = vmatprep.subr.mxu0 0.0
          %978 = vmatpush1.msra.mxu0 0.0
          %979 = vmatprep.subr.mxu0 0.0
          %980 = vmatpush1.msra.mxu0 0.0
          %981 = vmatprep.subr.mxu0 0.0
          %982 = vmatpush1.msra.mxu0 0.0
          %983 = vmatprep.subr.mxu0 0.0
          %984 = vmatpush1.msra.mxu0 0.0
          %985 = vmatprep.subr.mxu0 0.0
          %986 = vmatpush1.msra.mxu0 0.0
          %987 = vmatprep.subr.mxu0 0.0
          %988 = vmatpush1.msra.mxu0 0.0
          %989 = vmatprep.mubr.f32.mxu0 0.0
          %990 = vmatmul.mubr.f32.gmra.mrb[0].mxu0 %v923
          %v991 = vpop.f32.mrb[0].mxu0
          %v992 = vadd.f32 0.0, %v991
          %v993 = vpop.f32.mrb[0].mxu0
          %994 = vdwg.mxu0
          %v995 = vadd.f32 %v841, %v992
          %v996 = vmul.f32 %v995, 0.0625
          %v997 = vld [vmem:[#allocation9] sm:$0x1]
          %v999 = vlaneseq
          %v1000 = vshrl.u32 %v999, 7
          %v1001 = vsub.s32 0, %v1000
          %v1002 = vrot.slane %v997, %v1001
          %v1004 = vadd.f32 %v996, %v1002
          %v1005 = vlaneseq
          %v1006 = vand.u32 %v1005, 127
          %v1007 = vld [vmem:[#allocation11] sm:$0x1]
          %v1009 = vlaneseq
          %v1010 = vshrl.u32 %v1009, 7
          %v1011 = vsub.s32 0, %v1010
          %v1012 = vrot.slane %v1007, %v1011
          %v1014 = vmul.f32 %v1004, %v1012
          %vm1015 = vcmask 1041408
          %v1016 = vsel %vm1015, %v1014, 0.0
          %1017 = vadd.xlane.f32.xlu0 %v1016
          %v1018 = vpop.xlane.xlu0 %1017
          %vm1019 = vcmp.eq.s32.totalorder %v1006, 0
          %v1020 = vsel %vm1019, %v1018, 0.0
          %v1021 = vld [vmem:[#allocation12] sm:$0x1]
          %v1023 = vlaneseq
          %v1024 = vshrl.u32 %v1023, 7
          %v1025 = vsub.s32 0, %v1024
          %v1026 = vrot.slane %v1021, %v1025
          %v1028 = vadd.f32 %v1020, %v1026
          %1029 = vst [vmem:[#allocation14] sm:$0x3] %v1028
        $region76: #{vmamba_discriminator_forward.1} parent=43 // pred_fallthru
          _
        // Predicated region
        $region77: #{vmamba_discriminator_forward.1} parent=43 // pred_check
          %p1030 = pneg %p187
        $region78: #{vmamba_discriminator_forward.1} parent=43 // pred_check_branch
          %1032 = sbr.rel (%p1030) target = $region80
        $region79: #{vmamba_discriminator_forward.1} parent=43 // pred_region
          %s1034 = ssub.s32 32, 32
          %1035 = vsyncadd [#allocation5], %s1034
          %s1036 = smul.addr %s28, 32
          %s1037 = scalar_lea.hbm %s6, %s1036
          %s1039 = sshll.u32 [#allocation14], 4
          %s1040 = int_to_ptr.vmem [resolvable:$true] %s1039
          %1042 = dma.vmem_to_hbm [thread:$0]  %s1040, 32, %s1037, [#allocation5]
        $region80: #{vmamba_discriminator_forward.1} parent=43 // pred_fallthru
          _
        // Predicated region
        $region81: #{vmamba_discriminator_forward.1} parent=43 // pred_check
          %p1043 = pneg %p187
        $region82: #{vmamba_discriminator_forward.1} parent=43 // pred_check_branch
          %1045 = sbr.rel (%p1043) target = $region84
        $region83: #{vmamba_discriminator_forward.1} parent=43 // pred_region
          %1046 = dma.done [#allocation5], 32
        $region84: #{vmamba_discriminator_forward.1} parent=43 // pred_fallthru
          _
      $region44: #{vmamba_discriminator_forward.1} parent=5 // pred_fallthru
        _
      %p1047 = scmp.le.s32.totalorder 2, %s19
      // Predicated region
      $region85: #{vmamba_discriminator_forward.1} parent=5 // pred_check
        %p1048 = pneg %p1047
      $region86: #{vmamba_discriminator_forward.1} parent=5 // pred_check_branch
        %1050 = sbr.rel (%p1048) target = $region88
      $region87: #{vmamba_discriminator_forward.1} parent=5 // pred_region
        %s1051 = ssub.s32 %s19, 2
      $region88: #{vmamba_discriminator_forward.1} parent=5 // pred_fallthru
        _
    $region6: #{vmamba_discriminator_forward.1} parent=1 // loop_footer
      %s23 = sadd.s32 1, %s19
    $region7: #{vmamba_discriminator_forward.1} parent=1 // loop_footer_branch
      %18 = sbr.rel target = $region3
    $region8: #{vmamba_discriminator_forward.1} parent=1 // loop_exit
      _
    %1052 = vsyncpa [#allocation4], 1
    %s1053 = scalar_lea.sflag [#allocation4], 1
    %1054 = vsyncpa %s1053, 1
    %1055 = vsyncpa [#allocation7], 1
    %1056 = vsyncpa [#allocation10], 1
    %1057 = vsyncpa [#allocation13], 1
    %1058 = vsyncpa [#allocation5], 1
    %s1059 = scalar_lea.sflag [#allocation5], 1
    %1060 = vsyncpa %s1059, 1

</llo_original>
